<compile_context>
chip_gen: v5e
topology: v5e:2x2
jax: 0.10.0
libtpu: 0.0.40
codegen_flags: <defaults>
</compile_context>

<pallas_src>
import jax
import jax.numpy as jnp
from jax.experimental import pallas as pl
from jax.experimental.pallas import tpu as pltpu


# ----------------------------------------------------------------------------
# helpers
# ----------------------------------------------------------------------------
def _round_up(x, m):
    return ((x + m - 1) // m) * m


def _pad_nodes(n):
    """Node-count padding.  Coarser granularity for larger graphs so the tile
    picker below never falls back to 128-wide tiles (HBM-roofline fix)."""
    if n <= 256:
        return _round_up(n, 128)
    if n <= 1024:
        return _round_up(n, 256)
    return _round_up(n, 512)


def _pad2d(x, rows, cols):
    r, c = x.shape
    if r == rows and c == cols:
        return x
    return jnp.pad(x, ((0, rows - r), (0, cols - c)))


def _pick_tile(dim, pref):
    """Largest size <= pref (stepping down by 128) that divides `dim`;
    `dim` is a multiple of 128 so this always terminates at >= 128."""
    t = min(pref, dim)
    while dim % t != 0:
        t -= 128
    return t


# ----------------------------------------------------------------------------
# Kernel 1: dinv = rsqrt(rowsum(A) + 1)   (tiled reduction over int8 A)
# ----------------------------------------------------------------------------
def _degree_kernel(a_ref, dinv_ref, acc_ref):
    k = pl.program_id(1)

    @pl.when(k == 0)
    def _():
        acc_ref[...] = jnp.zeros_like(acc_ref)

    acc_ref[...] += jnp.sum(a_ref[...].astype(jnp.float32),
                            axis=1, keepdims=True)

    @pl.when(k == pl.num_programs(1) - 1)
    def _():
        dinv_ref[...] = jax.lax.rsqrt(acc_ref[...] + 1.0)   # +1 self loop


def compute_dinv(adj_i8):
    """adj_i8: padded [Np, Np] int8 adjacency -> f32 [Np, 1] D^{-1/2}."""
    n_pad = adj_i8.shape[0]
    tm = _pick_tile(n_pad, 512)
    tk = _pick_tile(n_pad, 1024)
    return pl.pallas_call(
        _degree_kernel,
        out_shape=jax.ShapeDtypeStruct((n_pad, 1), jnp.float32),
        grid=(n_pad // tm, n_pad // tk),
        in_specs=[pl.BlockSpec((tm, tk), lambda i, k: (i, k))],
        out_specs=pl.BlockSpec((tm, 1), lambda i, k: (i, 0)),
        scratch_shapes=[pltpu.VMEM((tm, 1), jnp.float32)],
        compiler_params=pltpu.CompilerParams(
            dimension_semantics=("parallel", "arbitrary")),
        cost_estimate=pl.CostEstimate(
            flops=adj_i8.size, transcendentals=n_pad,
            bytes_accessed=adj_i8.size + n_pad * 4),
    )(adj_i8)


# ----------------------------------------------------------------------------
# Kernel 2: Y = dinv * (X @ W)   (dinv scale fused into matmul epilogue)
# ----------------------------------------------------------------------------
def _xw_kernel(x_ref, w_ref, dinv_ref, o_ref, acc_ref):
    k = pl.program_id(2)

    @pl.when(k == 0)
    def _():
        acc_ref[...] = jnp.zeros_like(acc_ref)

    acc_ref[...] += jnp.dot(x_ref[...], w_ref[...],
                            preferred_element_type=jnp.float32)

    @pl.when(k == pl.num_programs(2) - 1)
    def _():
        o_ref[...] = (dinv_ref[...] * acc_ref[...]).astype(o_ref.dtype)


def feature_transform(h, w, dinv, *, tm_pref=1024, tn_pref=256, tk_pref=512):
    m, kdim = h.shape
    k2, n = w.shape
    assert kdim == k2
    tm = _pick_tile(m, tm_pref)
    tn = _pick_tile(n, tn_pref)
    tk = _pick_tile(kdim, tk_pref)
    return pl.pallas_call(
        _xw_kernel,
        out_shape=jax.ShapeDtypeStruct((m, n), jnp.bfloat16),
        grid=(m // tm, n // tn, kdim // tk),
        in_specs=[
            pl.BlockSpec((tm, tk), lambda i, j, k: (i, k)),
            pl.BlockSpec((tk, tn), lambda i, j, k: (k, j)),
            pl.BlockSpec((tm, 1), lambda i, j, k: (i, 0)),
        ],
        out_specs=pl.BlockSpec((tm, tn), lambda i, j, k: (i, j)),
        scratch_shapes=[pltpu.VMEM((tm, tn), jnp.float32)],
        compiler_params=pltpu.CompilerParams(
            dimension_semantics=("parallel", "parallel", "arbitrary")),
        cost_estimate=pl.CostEstimate(
            flops=2 * m * n * kdim, transcendentals=0,
            bytes_accessed=m * kdim * 2 + kdim * n * 2 + m * 4 + m * n * 2),
    )(h, w, dinv)


# ----------------------------------------------------------------------------
# Kernel 3: out = dinv * (A @ Y + Y) + b   (+ optional ReLU)
#   A is streamed as int8 and cast to bf16 in VMEM; f32 accumulator.
# ----------------------------------------------------------------------------
def _make_agg_kernel(apply_relu):
    def kernel(a_ref, y_ref, yrow_ref, dinv_ref, bias_ref, o_ref, acc_ref):
        k = pl.program_id(2)

        @pl.when(k == 0)
        def _():
            acc_ref[...] = jnp.zeros_like(acc_ref)

        # int8 0/1 tile -> bf16 (exact) for the MXU.
        a = a_ref[...].astype(jnp.float32).astype(jnp.bfloat16)
        acc_ref[...] += jnp.dot(a, y_ref[...],
                                preferred_element_type=jnp.float32)

        @pl.when(k == pl.num_programs(2) - 1)
        def _():
            out = acc_ref[...] + yrow_ref[...].astype(jnp.float32)  # (A+I) @ Y
            out = dinv_ref[...] * out + bias_ref[...]
            if apply_relu:
                out = jnp.maximum(out, 0.0)
            o_ref[...] = out.astype(o_ref.dtype)

    return kernel


def aggregate(adj_i8, y, dinv, bias, *, apply_relu, out_dtype,
              tm_pref=512, tn_pref=256, tk_pref=1024):
    n_pad = adj_i8.shape[0]
    n_pad2, co = y.shape
    assert n_pad == n_pad2
    # Keep >= 2 row tiles when possible so both v7x TensorCores get work.
    tm_cap = max(128, n_pad // 2)
    tm = _pick_tile(n_pad, min(tm_pref, tm_cap))
    tn = _pick_tile(co, tn_pref)
    tk = _pick_tile(n_pad, tk_pref)

    out_itemsize = jnp.dtype(out_dtype).itemsize
    bytes_accessed = (n_pad * n_pad * 1          # int8 adjacency
                      + 2 * n_pad * co * 2       # Y (K stream + row tiles)
                      + n_pad * 4 + co * 4       # dinv + bias
                      + n_pad * co * out_itemsize)

    return pl.pallas_call(
        _make_agg_kernel(apply_relu),
        out_shape=jax.ShapeDtypeStruct((n_pad, co), out_dtype),
        grid=(n_pad // tm, co // tn, n_pad // tk),
        in_specs=[
            pl.BlockSpec((tm, tk), lambda i, j, k: (i, k)),   # A (int8)
            pl.BlockSpec((tk, tn), lambda i, j, k: (k, j)),   # Y (K stream)
            pl.BlockSpec((tm, tn), lambda i, j, k: (i, j)),   # Y row tile (I)
            pl.BlockSpec((tm, 1), lambda i, j, k: (i, 0)),    # dinv rows
            pl.BlockSpec((1, tn), lambda i, j, k: (0, j)),    # bias
        ],
        out_specs=pl.BlockSpec((tm, tn), lambda i, j, k: (i, j)),
        scratch_shapes=[pltpu.VMEM((tm, tn), jnp.float32)],
        compiler_params=pltpu.CompilerParams(
            dimension_semantics=("parallel", "parallel", "arbitrary")),
        cost_estimate=pl.CostEstimate(
            flops=2 * n_pad * n_pad * co, transcendentals=0,
            bytes_accessed=bytes_accessed),
    )(adj_i8, y, y, dinv, bias)


# ----------------------------------------------------------------------------
# GCN module: parameter init + forward
# ----------------------------------------------------------------------------
def init_gcn_params(key, in_channels, hidden_channels, out_channels, num_layers):
    """Glorot-uniform weights, zero bias (GCNConv defaults), deterministic."""
    dims = ([in_channels]
            + [hidden_channels] * (num_layers - 1)
            + [out_channels])
    params = []
    for layer in range(num_layers):
        c_in, c_out = dims[layer], dims[layer + 1]
        key, sub = jax.random.split(key)
        limit = jnp.sqrt(6.0 / (c_in + c_out))
        w = jax.random.uniform(sub, (c_in, c_out), jnp.float32, -limit, limit)
        b = jnp.zeros((1, c_out), jnp.float32)
        params.append((w, b))
    return params


def gcn_forward(params, x, edge_index, edge_attr=None):
    """edge_index is a dense binary [N, N] adjacency; edge_attr is unused."""
    del edge_attr
    n, c_in = x.shape
    c_out_final = params[-1][0].shape[1]

    n_pad = _pad_nodes(n)
    c_in_pad = _round_up(c_in, 128)

    # Keep the raw 0/1 adjacency in int8 (exact); normalization is folded into
    # the matmul epilogues instead of materializing an Np x Np A_hat.
    adj_i8 = _pad2d(edge_index.astype(jnp.float32), n_pad, n_pad).astype(jnp.int8)
    dinv = compute_dinv(adj_i8)                                # f32 [Np, 1]

    h = _pad2d(x.astype(jnp.float32), n_pad, c_in_pad).astype(jnp.bfloat16)

    num_layers = len(params)
    for li, (w, b) in enumerate(params):
        is_last = (li == num_layers - 1)
        ci, co = w.shape
        ci_pad = _round_up(ci, 128)
        co_pad = _round_up(co, 128)
        w_p = _pad2d(w, ci_pad, co_pad).astype(jnp.bfloat16)
        b_p = _pad2d(b, 1, co_pad)                             # f32 bias

        # Y = D^{-1/2} (X @ W)
        y = feature_transform(h, w_p, dinv)
        # out = D^{-1/2} (A @ Y + Y) + b (+ ReLU on hidden layers).
        # Dropout = identity (inference semantics).
        h = aggregate(adj_i8, y, dinv, b_p, apply_relu=not is_last,
                      out_dtype=jnp.float32 if is_last else jnp.bfloat16)

    return h[:n, :c_out_final]


if __name__ == "__main__":
    # Small deterministic example.
    N = 16                # number of nodes
    IN_CH = 8
    HIDDEN = 32
    OUT_CH = 16
    NUM_LAYERS = 3
    DROPOUT = 0.5         # unused (eval mode)

    key = jax.random.PRNGKey(0)
    k_x, k_adj, k_par = jax.random.split(key, 3)

    x = jax.random.normal(k_x, (N, IN_CH), jnp.float32)

    # Random symmetric 0/1 adjacency (no self loops; kernel adds them).
    a_raw = (jax.random.uniform(k_adj, (N, N)) < 0.2).astype(jnp.float32)
    adj = jnp.maximum(a_raw, a_raw.T)
    adj = adj * (1.0 - jnp.eye(N, dtype=jnp.float32))

    edge_attr = None  # unused by the forward pass

    params = init_gcn_params(k_par, IN_CH, HIDDEN, OUT_CH, NUM_LAYERS)

    out = gcn_forward(params, x, adj, edge_attr)
    jax.block_until_ready(out)

    assert out.shape == (N, OUT_CH)
    assert jnp.all(jnp.isfinite(out))
    print("KERNEL_OK")
</pallas_src>

<mosaic_0001>
module attributes {stable_mosaic.version = 11 : i64} {
  func.func @_degree_kernel(%arg0: i32, %arg1: i32, %arg2: memref<128x128xi8, #tpu.memory_space<vmem>>, %arg3: memref<128x1xf32, #tpu.memory_space<vmem>>, %arg4: memref<128x1xf32, #tpu.memory_space<vmem>>) attributes {dimension_semantics = [#tpu.dimension_semantics<parallel>, #tpu.dimension_semantics<arbitrary>], iteration_bounds = array<i64: 1, 1>, scalar_prefetch = 0 : i64, scratch_operands = 1 : i64, tpu.core_type = #tpu.core_type<tc>, window_params = [{transform_indices = @transform_0, window_bounds = array<i64: 128, 128>}, {transform_indices = @transform_1, window_bounds = array<i64: 128, 1>}]} {
    %c0_i32 = arith.constant 0 : i32
    %0 = arith.cmpi eq, %arg1, %c0_i32 : i32
    %1 = arith.extui %0 : i1 to i32
    %c0_i32_0 = arith.constant 0 : i32
    %2 = arith.cmpi ne, %1, %c0_i32_0 : i32
    scf.if %2 {
      %cst_8 = arith.constant 0.000000e+00 : f32
      %13 = vector.broadcast %cst_8 : f32 to vector<128x1xf32>
      %c0_9 = arith.constant 0 : index
      %c0_10 = arith.constant 0 : index
      %14 = vector.load %arg4[%c0_9, %c0_10] : memref<128x1xf32, #tpu.memory_space<vmem>>, vector<128x1xf32>
      tpu.vector_store %arg4[%c0_9, %c0_10], %13 {strides = array<i32>} : memref<128x1xf32, #tpu.memory_space<vmem>>, vector<128x1xf32>,
    } else {
    }
    %c0 = arith.constant 0 : index
    %c0_1 = arith.constant 0 : index
    %3 = vector.load %arg4[%c0, %c0_1] : memref<128x1xf32, #tpu.memory_space<vmem>>, vector<128x1xf32>
    %c0_2 = arith.constant 0 : index
    %c0_3 = arith.constant 0 : index
    %4 = vector.load %arg2[%c0_2, %c0_3] : memref<128x128xi8, #tpu.memory_space<vmem>>, vector<128x128xi8>
    %5 = arith.sitofp %4 : vector<128x128xi8> to vector<128x128xf32>
    %cst = arith.constant dense<0.000000e+00> : vector<128xf32>
    %6 = vector.multi_reduction <add>, %5, %cst [1] : vector<128x128xf32> to vector<128xf32>
    %7 = vector.shape_cast %6 : vector<128xf32> to vector<128x1xf32>
    %8 = arith.addf %3, %7 : vector<128x1xf32>
    %c0_4 = arith.constant 0 : index
    %c0_5 = arith.constant 0 : index
    %9 = vector.load %arg4[%c0_4, %c0_5] : memref<128x1xf32, #tpu.memory_space<vmem>>, vector<128x1xf32>
    tpu.vector_store %arg4[%c0_4, %c0_5], %8 {strides = array<i32>} : memref<128x1xf32, #tpu.memory_space<vmem>>, vector<128x1xf32>,
    %c0_i32_6 = arith.constant 0 : i32
    %10 = arith.cmpi eq, %arg1, %c0_i32_6 : i32
    %11 = arith.extui %10 : i1 to i32
    %c0_i32_7 = arith.constant 0 : i32
    %12 = arith.cmpi ne, %11, %c0_i32_7 : i32
    scf.if %12 {
      %c0_8 = arith.constant 0 : index
      %c0_9 = arith.constant 0 : index
      %13 = vector.load %arg4[%c0_8, %c0_9] : memref<128x1xf32, #tpu.memory_space<vmem>>, vector<128x1xf32>
      %cst_10 = arith.constant 1.000000e+00 : f32
      %14 = vector.broadcast %cst_10 : f32 to vector<128x1xf32>
      %15 = arith.addf %13, %14 : vector<128x1xf32>
      %16 = math.rsqrt %15 : vector<128x1xf32>
      %c0_11 = arith.constant 0 : index
      %c0_12 = arith.constant 0 : index
      %17 = vector.load %arg3[%c0_11, %c0_12] : memref<128x1xf32, #tpu.memory_space<vmem>>, vector<128x1xf32>
      tpu.vector_store %arg3[%c0_11, %c0_12], %16 {strides = array<i32>} : memref<128x1xf32, #tpu.memory_space<vmem>>, vector<128x1xf32>,
    } else {
    }
    return
  }
  func.func @transform_0(%arg0: i32, %arg1: i32) -> (i32, i32) {
    %c0_i32 = arith.constant 0 : i32
    return %arg0, %arg1 : i32, i32
  }
  func.func @transform_1(%arg0: i32, %arg1: i32) -> (i32, i32) {
    %c0_i32 = arith.constant 0 : i32
    %c0_i32_0 = arith.constant 0 : i32
    return %arg0, %c0_i32 : i32, i32
  }
}

</mosaic_0001>

<llo_original>
// kernel: tpu_custom_call.1
$region0: #{tpu_custom_call.1}
  #allocation0 [shape = 'u32[]', space=smem, size = 0x4, offset = 0x4, fixed_abs, tag = 'smem constant byte address 0x4 - core index']
  #allocation1 [shape = 'u32[72,128]{1,0:T(1,128)}', space=vmem, size = 0x9000, scoped, tag = 'internal scratch']
  #allocation2 [shape = 'f32[128,1]{1,0:T(8,128)}', space=vmem, size = 0x10000, scoped, tag = 'scratch operand']
  %s0 = inlined_call_operand.hbm [shape: s8[128,128], index: 0, kind: input, shape index: {}]
  %s1 = inlined_call_operand.vmem [shape: f32[128,1], index: 1, kind: output, shape index: {}]
  %s2 = sld [smem:[#allocation0]]
  $region26: #{tpu_custom_call.1} parent=0
    _
  %s4 = ssub.s32 1, %s2
  %s5 = scalar_select 0, %s4, %s2
  $region1: #{tpu_custom_call.1} parent=0
    #allocation3 [shape = 'u8[16384]{0}', space=vmem, size = 0x4000, scoped, tag = 'input window, operand 0, single buffered']
    #allocation4 [shape = 's32[1]{0}', space=sflag, size = 0x4, scoped, tag = 'scoped memory for tpu_custom_call.1']
    %6 = vsyncpa [#allocation4], 0
    // Predicated region
    $region2: #{tpu_custom_call.1} parent=1 // pred_check
      _
    $region3: #{tpu_custom_call.1} parent=1 // pred_check_branch
      %8 = sbr.rel (0) target = $region5
    $region4: #{tpu_custom_call.1} parent=1 // pred_region
      %10 = vsyncadd [#allocation4], 0
      %s11 = sshll.u32 %s0, 4
      %s12 = int_to_ptr.hbm [resolvable:$true] %s11
      %s13 = sshll.u32 [#allocation3], 4
      %s14 = int_to_ptr.vmem [resolvable:$true] %s13
      %19 = dma.hbm_to_vmem [thread:$0]  %s12, 512, %s14, [#allocation4], 128, 128, 8
    $region5: #{tpu_custom_call.1} parent=1 // pred_fallthru
      _
    // Predicated region
    $region6: #{tpu_custom_call.1} parent=1 // pred_check
      _
    $region7: #{tpu_custom_call.1} parent=1 // pred_check_branch
      %21 = sbr.rel (0) target = $region9
    $region8: #{tpu_custom_call.1} parent=1 // pred_region
      %23 = dma.done [#allocation4], 512
    $region9: #{tpu_custom_call.1} parent=1 // pred_fallthru
      _
    %p24 = scmp.eq.s32.totalorder 0, 0
    // Predicated region
    $region10: #{tpu_custom_call.1} parent=1 // pred_check
      %p25 = pneg %p24
    $region11: #{tpu_custom_call.1} parent=1 // pred_check_branch
      %27 = sbr.rel (%p25) target = $region13
    $region12: #{tpu_custom_call.1} parent=1 // pred_region
      %vm28 = vcmask 7168
      %29 = vst.msk [vmem:[#allocation2] sm:$0xff] %vm28, 0.0
      %30 = vst.msk [vmem:[#allocation2 + $0x8] sm:$0xff] %vm28, 0.0
      %31 = vst.msk [vmem:[#allocation2 + $0x10] sm:$0xff] %vm28, 0.0
      %32 = vst.msk [vmem:[#allocation2 + $0x18] sm:$0xff] %vm28, 0.0
      %33 = vst.msk [vmem:[#allocation2 + $0x20] sm:$0xff] %vm28, 0.0
      %34 = vst.msk [vmem:[#allocation2 + $0x28] sm:$0xff] %vm28, 0.0
      %35 = vst.msk [vmem:[#allocation2 + $0x30] sm:$0xff] %vm28, 0.0
      %36 = vst.msk [vmem:[#allocation2 + $0x38] sm:$0xff] %vm28, 0.0
      %37 = vst.msk [vmem:[#allocation2 + $0x40] sm:$0xff] %vm28, 0.0
      %38 = vst.msk [vmem:[#allocation2 + $0x48] sm:$0xff] %vm28, 0.0
      %39 = vst.msk [vmem:[#allocation2 + $0x50] sm:$0xff] %vm28, 0.0
      %40 = vst.msk [vmem:[#allocation2 + $0x58] sm:$0xff] %vm28, 0.0
      %41 = vst.msk [vmem:[#allocation2 + $0x60] sm:$0xff] %vm28, 0.0
      %42 = vst.msk [vmem:[#allocation2 + $0x68] sm:$0xff] %vm28, 0.0
      %43 = vst.msk [vmem:[#allocation2 + $0x70] sm:$0xff] %vm28, 0.0
      %44 = vst.msk [vmem:[#allocation2 + $0x78] sm:$0xff] %vm28, 0.0
    $region13: #{tpu_custom_call.1} parent=1 // pred_fallthru
      _
    %v45 = vld [vmem:[#allocation2] sm:$0xff]
    %v46 = vld [vmem:[#allocation2 + $0x8] sm:$0xff]
    %v47 = vld [vmem:[#allocation2 + $0x10] sm:$0xff]
    %v48 = vld [vmem:[#allocation2 + $0x18] sm:$0xff]
    %v49 = vld [vmem:[#allocation2 + $0x20] sm:$0xff]
    %v50 = vld [vmem:[#allocation2 + $0x28] sm:$0xff]
    %v51 = vld [vmem:[#allocation2 + $0x30] sm:$0xff]
    %v52 = vld [vmem:[#allocation2 + $0x38] sm:$0xff]
    %v53 = vld [vmem:[#allocation2 + $0x40] sm:$0xff]
    %v54 = vld [vmem:[#allocation2 + $0x48] sm:$0xff]
    %v55 = vld [vmem:[#allocation2 + $0x50] sm:$0xff]
    %v56 = vld [vmem:[#allocation2 + $0x58] sm:$0xff]
    %v57 = vld [vmem:[#allocation2 + $0x60] sm:$0xff]
    %v58 = vld [vmem:[#allocation2 + $0x68] sm:$0xff]
    %v59 = vld [vmem:[#allocation2 + $0x70] sm:$0xff]
    %v60 = vld [vmem:[#allocation2 + $0x78] sm:$0xff]
    %v61 = vld [vmem:[#allocation3] sm:$0xff]
    %v62 = vld [vmem:[#allocation3 + $0x8] sm:$0xff]
    %v63 = vld [vmem:[#allocation3 + $0x10] sm:$0xff]
    %v64 = vld [vmem:[#allocation3 + $0x18] sm:$0xff]
    %v65 = vunpack.c.0.s8 %v61
    %v66 = vunpack.c.1.s8 %v61
    %v67 = vunpack.c.2.s8 %v61
    %v68 = vunpack.c.3.s8 %v61
    %v69 = vunpack.c.0.s8 %v62
    %v70 = vunpack.c.1.s8 %v62
    %v71 = vunpack.c.2.s8 %v62
    %v72 = vunpack.c.3.s8 %v62
    %v73 = vunpack.c.0.s8 %v63
    %v74 = vunpack.c.1.s8 %v63
    %v75 = vunpack.c.2.s8 %v63
    %v76 = vunpack.c.3.s8 %v63
    %v77 = vunpack.c.0.s8 %v64
    %v78 = vunpack.c.1.s8 %v64
    %v79 = vunpack.c.2.s8 %v64
    %v80 = vunpack.c.3.s8 %v64
    %v81 = vcvt.s32.f32 %v65
    %v82 = vcvt.s32.f32 %v66
    %v83 = vcvt.s32.f32 %v67
    %v84 = vcvt.s32.f32 %v68
    %v85 = vcvt.s32.f32 %v69
    %v86 = vcvt.s32.f32 %v70
    %v87 = vcvt.s32.f32 %v71
    %v88 = vcvt.s32.f32 %v72
    %v89 = vcvt.s32.f32 %v73
    %v90 = vcvt.s32.f32 %v74
    %v91 = vcvt.s32.f32 %v75
    %v92 = vcvt.s32.f32 %v76
    %v93 = vcvt.s32.f32 %v77
    %v94 = vcvt.s32.f32 %v78
    %v95 = vcvt.s32.f32 %v79
    %v96 = vcvt.s32.f32 %v80
    %97 = vadd.xlane.f32.xlu0 %v81
    %v98 = vpop.xlane.xlu0 %97
    %99 = vadd.xlane.f32.xlu0 %v82
    %v100 = vpop.xlane.xlu0 %99
    %101 = vadd.xlane.f32.xlu0 %v83
    %v102 = vpop.xlane.xlu0 %101
    %103 = vadd.xlane.f32.xlu0 %v84
    %v104 = vpop.xlane.xlu0 %103
    %105 = vadd.xlane.f32.xlu0 %v85
    %v106 = vpop.xlane.xlu0 %105
    %107 = vadd.xlane.f32.xlu0 %v86
    %v108 = vpop.xlane.xlu0 %107
    %109 = vadd.xlane.f32.xlu0 %v87
    %v110 = vpop.xlane.xlu0 %109
    %111 = vadd.xlane.f32.xlu0 %v88
    %v112 = vpop.xlane.xlu0 %111
    %113 = vadd.xlane.f32.xlu0 %v89
    %v114 = vpop.xlane.xlu0 %113
    %115 = vadd.xlane.f32.xlu0 %v90
    %v116 = vpop.xlane.xlu0 %115
    %117 = vadd.xlane.f32.xlu0 %v91
    %v118 = vpop.xlane.xlu0 %117
    %119 = vadd.xlane.f32.xlu0 %v92
    %v120 = vpop.xlane.xlu0 %119
    %121 = vadd.xlane.f32.xlu0 %v93
    %v122 = vpop.xlane.xlu0 %121
    %123 = vadd.xlane.f32.xlu0 %v94
    %v124 = vpop.xlane.xlu0 %123
    %125 = vadd.xlane.f32.xlu0 %v95
    %v126 = vpop.xlane.xlu0 %125
    %127 = vadd.xlane.f32.xlu0 %v96
    %v128 = vpop.xlane.xlu0 %127
    %v129 = vadd.f32 %v45, %v98
    %v130 = vadd.f32 %v46, %v100
    %v131 = vadd.f32 %v47, %v102
    %v132 = vadd.f32 %v48, %v104
    %v133 = vadd.f32 %v49, %v106
    %v134 = vadd.f32 %v50, %v108
    %v135 = vadd.f32 %v51, %v110
    %v136 = vadd.f32 %v52, %v112
    %v137 = vadd.f32 %v53, %v114
    %v138 = vadd.f32 %v54, %v116
    %v139 = vadd.f32 %v55, %v118
    %v140 = vadd.f32 %v56, %v120
    %v141 = vadd.f32 %v57, %v122
    %v142 = vadd.f32 %v58, %v124
    %v143 = vadd.f32 %v59, %v126
    %v144 = vadd.f32 %v60, %v128
    %vm145 = vcmask 7168
    %146 = vst.msk [vmem:[#allocation2] sm:$0xff] %vm145, %v129
    %147 = vst.msk [vmem:[#allocation2 + $0x8] sm:$0xff] %vm145, %v130
    %148 = vst.msk [vmem:[#allocation2 + $0x10] sm:$0xff] %vm145, %v131
    %149 = vst.msk [vmem:[#allocation2 + $0x18] sm:$0xff] %vm145, %v132
    %150 = vst.msk [vmem:[#allocation2 + $0x20] sm:$0xff] %vm145, %v133
    %151 = vst.msk [vmem:[#allocation2 + $0x28] sm:$0xff] %vm145, %v134
    %152 = vst.msk [vmem:[#allocation2 + $0x30] sm:$0xff] %vm145, %v135
    %153 = vst.msk [vmem:[#allocation2 + $0x38] sm:$0xff] %vm145, %v136
    %154 = vst.msk [vmem:[#allocation2 + $0x40] sm:$0xff] %vm145, %v137
    %155 = vst.msk [vmem:[#allocation2 + $0x48] sm:$0xff] %vm145, %v138
    %156 = vst.msk [vmem:[#allocation2 + $0x50] sm:$0xff] %vm145, %v139
    %157 = vst.msk [vmem:[#allocation2 + $0x58] sm:$0xff] %vm145, %v140
    %158 = vst.msk [vmem:[#allocation2 + $0x60] sm:$0xff] %vm145, %v141
    %159 = vst.msk [vmem:[#allocation2 + $0x68] sm:$0xff] %vm145, %v142
    %160 = vst.msk [vmem:[#allocation2 + $0x70] sm:$0xff] %vm145, %v143
    %161 = vst.msk [vmem:[#allocation2 + $0x78] sm:$0xff] %vm145, %v144
    // Predicated region
    $region14: #{tpu_custom_call.1} parent=1 // pred_check
      %p162 = pneg %p24
    $region15: #{tpu_custom_call.1} parent=1 // pred_check_branch
      %164 = sbr.rel (%p162) target = $region17
    $region16: #{tpu_custom_call.1} parent=1 // pred_region
      %v165 = vld [vmem:[#allocation2] sm:$0xff]
      %v166 = vld [vmem:[#allocation2 + $0x8] sm:$0xff]
      %v167 = vld [vmem:[#allocation2 + $0x10] sm:$0xff]
      %v168 = vld [vmem:[#allocation2 + $0x18] sm:$0xff]
      %v169 = vld [vmem:[#allocation2 + $0x20] sm:$0xff]
      %v170 = vld [vmem:[#allocation2 + $0x28] sm:$0xff]
      %v171 = vld [vmem:[#allocation2 + $0x30] sm:$0xff]
      %v172 = vld [vmem:[#allocation2 + $0x38] sm:$0xff]
      %v173 = vld [vmem:[#allocation2 + $0x40] sm:$0xff]
      %v174 = vld [vmem:[#allocation2 + $0x48] sm:$0xff]
      %v175 = vld [vmem:[#allocation2 + $0x50] sm:$0xff]
      %v176 = vld [vmem:[#allocation2 + $0x58] sm:$0xff]
      %v177 = vld [vmem:[#allocation2 + $0x60] sm:$0xff]
      %v178 = vld [vmem:[#allocation2 + $0x68] sm:$0xff]
      %v179 = vld [vmem:[#allocation2 + $0x70] sm:$0xff]
      %v180 = vld [vmem:[#allocation2 + $0x78] sm:$0xff]
      %v181 = vadd.f32 %v165, 1.0
      %v182 = vadd.f32 %v166, 1.0
      %v183 = vadd.f32 %v167, 1.0
      %v184 = vadd.f32 %v168, 1.0
      %v185 = vadd.f32 %v169, 1.0
      %v186 = vadd.f32 %v170, 1.0
      %v187 = vadd.f32 %v171, 1.0
      %v188 = vadd.f32 %v172, 1.0
      %v189 = vadd.f32 %v173, 1.0
      %v190 = vadd.f32 %v174, 1.0
      %v191 = vadd.f32 %v175, 1.0
      %v192 = vadd.f32 %v176, 1.0
      %v193 = vadd.f32 %v177, 1.0
      %v194 = vadd.f32 %v178, 1.0
      %v195 = vadd.f32 %v179, 1.0
      %v196 = vadd.f32 %v180, 1.0
      %v197 = vrsqrt.pop %v181
      %v198 = vmul.f32 %v197, %v181
      %v199 = vmul.f32 %v198, %v197
      %v200 = vmul.f32 0.5, %v199
      %v201 = vsub.f32 1.5, %v200
      %v202 = vmul.f32 %v197, %v201
      %vm203 = vweird.f32 %v181
      %vm204 = vweird.f32 %v197
      %vm205 = vmor %vm203, %vm204
      %v206 = vsel %vm205, %v197, %v202
      %v207 = vrsqrt.pop %v182
      %v208 = vmul.f32 %v207, %v182
      %v209 = vmul.f32 %v208, %v207
      %v210 = vmul.f32 0.5, %v209
      %v211 = vsub.f32 1.5, %v210
      %v212 = vmul.f32 %v207, %v211
      %vm213 = vweird.f32 %v182
      %vm214 = vweird.f32 %v207
      %vm215 = vmor %vm213, %vm214
      %v216 = vsel %vm215, %v207, %v212
      %v217 = vrsqrt.pop %v183
      %v218 = vmul.f32 %v217, %v183
      %v219 = vmul.f32 %v218, %v217
      %v220 = vmul.f32 0.5, %v219
      %v221 = vsub.f32 1.5, %v220
      %v222 = vmul.f32 %v217, %v221
      %vm223 = vweird.f32 %v183
      %vm224 = vweird.f32 %v217
      %vm225 = vmor %vm223, %vm224
      %v226 = vsel %vm225, %v217, %v222
      %v227 = vrsqrt.pop %v184
      %v228 = vmul.f32 %v227, %v184
      %v229 = vmul.f32 %v228, %v227
      %v230 = vmul.f32 0.5, %v229
      %v231 = vsub.f32 1.5, %v230
      %v232 = vmul.f32 %v227, %v231
      %vm233 = vweird.f32 %v184
      %vm234 = vweird.f32 %v227
      %vm235 = vmor %vm233, %vm234
      %v236 = vsel %vm235, %v227, %v232
      %v237 = vrsqrt.pop %v185
      %v238 = vmul.f32 %v237, %v185
      %v239 = vmul.f32 %v238, %v237
      %v240 = vmul.f32 0.5, %v239
      %v241 = vsub.f32 1.5, %v240
      %v242 = vmul.f32 %v237, %v241
      %vm243 = vweird.f32 %v185
      %vm244 = vweird.f32 %v237
      %vm245 = vmor %vm243, %vm244
      %v246 = vsel %vm245, %v237, %v242
      %v247 = vrsqrt.pop %v186
      %v248 = vmul.f32 %v247, %v186
      %v249 = vmul.f32 %v248, %v247
      %v250 = vmul.f32 0.5, %v249
      %v251 = vsub.f32 1.5, %v250
      %v252 = vmul.f32 %v247, %v251
      %vm253 = vweird.f32 %v186
      %vm254 = vweird.f32 %v247
      %vm255 = vmor %vm253, %vm254
      %v256 = vsel %vm255, %v247, %v252
      %v257 = vrsqrt.pop %v187
      %v258 = vmul.f32 %v257, %v187
      %v259 = vmul.f32 %v258, %v257
      %v260 = vmul.f32 0.5, %v259
      %v261 = vsub.f32 1.5, %v260
      %v262 = vmul.f32 %v257, %v261
      %vm263 = vweird.f32 %v187
      %vm264 = vweird.f32 %v257
      %vm265 = vmor %vm263, %vm264
      %v266 = vsel %vm265, %v257, %v262
      %v267 = vrsqrt.pop %v188
      %v268 = vmul.f32 %v267, %v188
      %v269 = vmul.f32 %v268, %v267
      %v270 = vmul.f32 0.5, %v269
      %v271 = vsub.f32 1.5, %v270
      %v272 = vmul.f32 %v267, %v271
      %vm273 = vweird.f32 %v188
      %vm274 = vweird.f32 %v267
      %vm275 = vmor %vm273, %vm274
      %v276 = vsel %vm275, %v267, %v272
      %v277 = vrsqrt.pop %v189
      %v278 = vmul.f32 %v277, %v189
      %v279 = vmul.f32 %v278, %v277
      %v280 = vmul.f32 0.5, %v279
      %v281 = vsub.f32 1.5, %v280
      %v282 = vmul.f32 %v277, %v281
      %vm283 = vweird.f32 %v189
      %vm284 = vweird.f32 %v277
      %vm285 = vmor %vm283, %vm284
      %v286 = vsel %vm285, %v277, %v282
      %v287 = vrsqrt.pop %v190
      %v288 = vmul.f32 %v287, %v190
      %v289 = vmul.f32 %v288, %v287
      %v290 = vmul.f32 0.5, %v289
      %v291 = vsub.f32 1.5, %v290
      %v292 = vmul.f32 %v287, %v291
      %vm293 = vweird.f32 %v190
      %vm294 = vweird.f32 %v287
      %vm295 = vmor %vm293, %vm294
      %v296 = vsel %vm295, %v287, %v292
      %v297 = vrsqrt.pop %v191
      %v298 = vmul.f32 %v297, %v191
      %v299 = vmul.f32 %v298, %v297
      %v300 = vmul.f32 0.5, %v299
      %v301 = vsub.f32 1.5, %v300
      %v302 = vmul.f32 %v297, %v301
      %vm303 = vweird.f32 %v191
      %vm304 = vweird.f32 %v297
      %vm305 = vmor %vm303, %vm304
      %v306 = vsel %vm305, %v297, %v302
      %v307 = vrsqrt.pop %v192
      %v308 = vmul.f32 %v307, %v192
      %v309 = vmul.f32 %v308, %v307
      %v310 = vmul.f32 0.5, %v309
      %v311 = vsub.f32 1.5, %v310
      %v312 = vmul.f32 %v307, %v311
      %vm313 = vweird.f32 %v192
      %vm314 = vweird.f32 %v307
      %vm315 = vmor %vm313, %vm314
      %v316 = vsel %vm315, %v307, %v312
      %v317 = vrsqrt.pop %v193
      %v318 = vmul.f32 %v317, %v193
      %v319 = vmul.f32 %v318, %v317
      %v320 = vmul.f32 0.5, %v319
      %v321 = vsub.f32 1.5, %v320
      %v322 = vmul.f32 %v317, %v321
      %vm323 = vweird.f32 %v193
      %vm324 = vweird.f32 %v317
      %vm325 = vmor %vm323, %vm324
      %v326 = vsel %vm325, %v317, %v322
      %v327 = vrsqrt.pop %v194
      %v328 = vmul.f32 %v327, %v194
      %v329 = vmul.f32 %v328, %v327
      %v330 = vmul.f32 0.5, %v329
      %v331 = vsub.f32 1.5, %v330
      %v332 = vmul.f32 %v327, %v331
      %vm333 = vweird.f32 %v194
      %vm334 = vweird.f32 %v327
      %vm335 = vmor %vm333, %vm334
      %v336 = vsel %vm335, %v327, %v332
      %v337 = vrsqrt.pop %v195
      %v338 = vmul.f32 %v337, %v195
      %v339 = vmul.f32 %v338, %v337
      %v340 = vmul.f32 0.5, %v339
      %v341 = vsub.f32 1.5, %v340
      %v342 = vmul.f32 %v337, %v341
      %vm343 = vweird.f32 %v195
      %vm344 = vweird.f32 %v337
      %vm345 = vmor %vm343, %vm344
      %v346 = vsel %vm345, %v337, %v342
      %v347 = vrsqrt.pop %v196
      %v348 = vmul.f32 %v347, %v196
      %v349 = vmul.f32 %v348, %v347
      %v350 = vmul.f32 0.5, %v349
      %v351 = vsub.f32 1.5, %v350
      %v352 = vmul.f32 %v347, %v351
      %vm353 = vweird.f32 %v196
      %vm354 = vweird.f32 %v347
      %vm355 = vmor %vm353, %vm354
      %v356 = vsel %vm355, %v347, %v352
      %357 = vst.msk [vmem:[%s1] sm:$0xff] %vm145, %v206
      %358 = vst.msk [vmem:[%s1 + $0x8] sm:$0xff] %vm145, %v216
      %359 = vst.msk [vmem:[%s1 + $0x10] sm:$0xff] %vm145, %v226
      %360 = vst.msk [vmem:[%s1 + $0x18] sm:$0xff] %vm145, %v236
      %361 = vst.msk [vmem:[%s1 + $0x20] sm:$0xff] %vm145, %v246
      %362 = vst.msk [vmem:[%s1 + $0x28] sm:$0xff] %vm145, %v256
      %363 = vst.msk [vmem:[%s1 + $0x30] sm:$0xff] %vm145, %v266
      %364 = vst.msk [vmem:[%s1 + $0x38] sm:$0xff] %vm145, %v276
      %365 = vst.msk [vmem:[%s1 + $0x40] sm:$0xff] %vm145, %v286
      %366 = vst.msk [vmem:[%s1 + $0x48] sm:$0xff] %vm145, %v296
      %367 = vst.msk [vmem:[%s1 + $0x50] sm:$0xff] %vm145, %v306
      %368 = vst.msk [vmem:[%s1 + $0x58] sm:$0xff] %vm145, %v316
      %369 = vst.msk [vmem:[%s1 + $0x60] sm:$0xff] %vm145, %v326
      %370 = vst.msk [vmem:[%s1 + $0x68] sm:$0xff] %vm145, %v336
      %371 = vst.msk [vmem:[%s1 + $0x70] sm:$0xff] %vm145, %v346
      %372 = vst.msk [vmem:[%s1 + $0x78] sm:$0xff] %vm145, %v356
    $region17: #{tpu_custom_call.1} parent=1 // pred_fallthru
      _
    // Predicated region
    $region18: #{tpu_custom_call.1} parent=1 // pred_check
      _
    $region19: #{tpu_custom_call.1} parent=1 // pred_check_branch
      %374 = sbr.rel (0) target = $region21
    $region20: #{tpu_custom_call.1} parent=1 // pred_region
      _
    $region21: #{tpu_custom_call.1} parent=1 // pred_fallthru
      _
    // Predicated region
    $region22: #{tpu_custom_call.1} parent=1 // pred_check
      _
    $region23: #{tpu_custom_call.1} parent=1 // pred_check_branch
      %376 = sbr.rel (0) target = $region25
    $region24: #{tpu_custom_call.1} parent=1 // pred_region
      _
    $region25: #{tpu_custom_call.1} parent=1 // pred_fallthru
      _
    %377 = vsyncpa [#allocation4], 1

</llo_original>
